<compile_context>
chip_gen: v6e
topology: v6e:2x2x1
jax: 0.10.0
libtpu: 0.0.40
codegen_flags: <defaults>
</compile_context>

<pallas_src>
import jax
import jax.numpy as jnp
from jax.experimental import pallas as pl
from jax.experimental.pallas import tpu as pltpu


# ----------------------------- kernel ---------------------------------------


def _make_kernel(fold_w1: bool, n_cols: int, n_valid: int, tk: int, mask_k: bool):
    """n_cols: columns carried through the A-contraction (rowsum is column n_cols)."""

    def kernel(*refs):
        if fold_w1:
            adj_ref, rhs_ref, b1_ref, w2_ref, out_ref, acc_ref = refs
        else:
            adj_ref, rhs_ref, w1_ref, b1_ref, w2_ref, out_ref, acc_ref = refs

        k_id = pl.program_id(1)

        @pl.when(k_id == 0)
        def _init():
            acc_ref[...] = jnp.zeros_like(acc_ref)

        adj_blk = adj_ref[...]                              # [tm, tk] (f32 or bf16)
        if mask_k:
            # Ragged last K block: zero the out-of-range adj columns so garbage
            # never reaches the accumulator (rhs rows were zero-padded).
            col = jax.lax.broadcasted_iota(jnp.int32, adj_blk.shape, 1) + k_id * tk
            adj_blk = jnp.where(col < n_valid, adj_blk, jnp.zeros_like(adj_blk))

        # acc += A_block @ [rhs | 1]  -> last column accumulates the row-sum.
        acc_ref[...] += jnp.dot(adj_blk, rhs_ref[...],
                                preferred_element_type=jnp.float32)

        @pl.when(k_id == pl.num_programs(1) - 1)
        def _finalize():
            acc = acc_ref[...]                              # [tm, n_cols + 1] f32
            rowsum = acc[:, n_cols:n_cols + 1]
            # normalize(): np.power(rowsum, -1) with inf -> 0 semantics.
            r_inv = jnp.where(rowsum == 0.0, 0.0, 1.0 / rowsum)
            zz = acc[:, :n_cols] * r_inv                    # D^{-1}(A @ rhs)
            if fold_w1:
                # rhs was pre-multiplied by W1 in the wrapper: (A z) W1 == A (z W1).
                h = jnp.tanh(zz + b1_ref[...])
            else:
                h = jnp.tanh(
                    jnp.dot(zz.astype(w1_ref.dtype), w1_ref[...],
                            preferred_element_type=jnp.float32) + b1_ref[...])
            out_ref[...] = jnp.dot(h.astype(w2_ref.dtype), w2_ref[...],
                                   preferred_element_type=jnp.float32)

    return kernel


# ----------------------------- tiling helpers --------------------------------


def _cdiv(a: int, b: int) -> int:
    return (a + b - 1) // b


def _round_up(x: int, m: int) -> int:
    return _cdiv(x, m) * m


def _pick_row_tile(N: int, cap: int, gran: int) -> int:
    """Row-tile size: MXU-friendly, >=2 tiles (v7x megacore), prefer even count."""
    if N <= gran:
        return N
    if N <= cap:
        tm = _round_up(_cdiv(N, 2), gran)       # at least 2 row tiles
    else:
        tm = max(gran, (cap // gran) * gran)
    nt = _cdiv(N, tm)
    if nt > 1 and nt % 2 == 1:                   # prefer an even tile count
        tm2 = _round_up(_cdiv(N, nt + 1), gran)
        if tm2 >= gran and _cdiv(N, tm2) % 2 == 0:
            tm = tm2
    return tm


def _full_spec(arr):
    zeros = (0,) * arr.ndim
    return pl.BlockSpec(arr.shape, lambda i, k, _z=zeros: _z)


def _adj_spec(shape, index_map, buffers):
    if buffers > 2 and hasattr(pl, "Buffered"):
        try:
            return pl.BlockSpec(shape, index_map, pipeline_mode=pl.Buffered(buffers))
        except TypeError:       # older BlockSpec without pipeline_mode kwarg
            pass
    return pl.BlockSpec(shape, index_map)


# ----------------------------- wrapper ---------------------------------------


def features_forward(adj, z, w1, b1, w2, *, block_rows=None, block_k=None,
                     use_bf16=False):
    """adj: [N,N], z: [N,in], w1: [in,hid], b1: [1,hid] (or [hid]), w2: [hid,384].

    Linear weights are pre-transposed to [in, out] so all matmuls are plain
    row-major MXU contractions.  use_bf16=True streams adj (and the small
    resident operands) in bf16 with f32 accumulation — strongly recommended on
    v5e and generally ~2x end-to-end since the kernel is HBM-bound on adj.
    """
    N = adj.shape[0]
    in_size = z.shape[1]
    hidden = w1.shape[1]
    out_dim = w2.shape[1]

    mm_dtype = jnp.bfloat16 if use_bf16 else jnp.float32

    # adj is the only HBM-heavy operand: cast once in the wrapper (halves the
    # N^2 HBM stream for bf16 and removes the per-tile in-kernel VPU cast).
    adj = adj.astype(mm_dtype)
    z = z.astype(jnp.float32)
    w1 = w1.astype(jnp.float32)
    b1 = jnp.asarray(b1, jnp.float32).reshape(1, hidden)
    w2 = w2.astype(jnp.float32)

    # Shape-aware reassociation: carry min(in, hidden) columns through the
    # N^2-scaled contraction:  (A z) W1 == A (z W1).
    fold_w1 = hidden < in_size
    base = jnp.dot(z, w1, preferred_element_type=jnp.float32) if fold_w1 else z
    n_cols = base.shape[1]

    # Fold the row-sum into the MXU: ones column -> rowsum pops out of the same
    # matmul that computes A @ rhs (no cross-lane XLU reduction per tile).
    rhs = jnp.concatenate([base, jnp.ones((N, 1), jnp.float32)], axis=1)

    # ---- generation-aware tiling / VMEM budgets -----------------------------
    try:
        phys_vmem = int(pltpu.get_tpu_info().vmem_capacity_bytes)
    except Exception:
        phys_vmem = 64 << 20                    # conservative (v7x-sized) default
    small_vmem = phys_vmem <= (64 << 20)        # v7x: 64 MiB per TensorCore
    vmem_limit = min((48 << 20) if small_vmem else (96 << 20), phys_vmem * 3 // 4)
    tm_cap = 256 if small_vmem else 512         # v5e/v6e can afford bigger tiles
    tk_cap = 512 if small_vmem else 1024
    gran = 16 if use_bf16 else 8                # bf16 sublane tile is 16

    if block_rows is None:
        tm = _pick_row_tile(N, tm_cap, gran)
    else:
        tm = min(int(block_rows), N)
        if tm < N:
            tm = min(N, max(gran, (tm // gran) * gran))

    if block_k is None:
        tk = N if N <= tk_cap else tk_cap
    else:
        tk = min(int(block_k), N)
        if tk < N:
            tk = min(N, max(128, (tk // 128) * 128))   # lane-aligned K blocks

    nk = _cdiv(N, tk)
    mask_k = (N % tk) != 0

    # Zero-pad rhs rows to nk*tk so streamed K blocks never read garbage
    # (the matching out-of-range adj columns are masked to zero in-kernel).
    n_pad = nk * tk
    if n_pad != N:
        rhs = jnp.concatenate(
            [rhs, jnp.zeros((n_pad - N, rhs.shape[1]), jnp.float32)], axis=0)

    # Cast the small resident/streamed operands once here (not per grid step).
    rhs = rhs.astype(mm_dtype)
    w1c = w1.astype(mm_dtype)
    w2c = w2.astype(mm_dtype)
    kc = rhs.shape[1]

    grid = (_cdiv(N, tm), nk)
    total_steps = grid[0] * grid[1]
    adj_block_bytes = tm * tk * adj.dtype.itemsize
    # Deeper pipelining for small tiles (per-step overhead becomes visible).
    adj_buffers = 3 if (adj_block_bytes < (1 << 20) and total_steps >= 3) else 2

    in_specs = [_adj_spec((tm, tk), lambda i, k: (i, k), adj_buffers),  # streamed adj
                pl.BlockSpec((tk, kc), lambda i, k: (k, 0))]            # streamed rhs
    args = [adj, rhs]
    if not fold_w1:
        in_specs.append(_full_spec(w1c))
        args.append(w1c)
    in_specs += [_full_spec(b1), _full_spec(w2c)]
    args += [b1, w2c]

    return pl.pallas_call(
        _make_kernel(fold_w1, n_cols, N, tk, mask_k),
        out_shape=jax.ShapeDtypeStruct((N, out_dim), jnp.float32),
        grid=grid,
        in_specs=in_specs,
        out_specs=pl.BlockSpec((tm, out_dim), lambda i, k: (i, 0)),
        scratch_shapes=[pltpu.VMEM((tm, kc), jnp.float32)],             # f32 accumulator
        compiler_params=pltpu.CompilerParams(
            dimension_semantics=("parallel", "arbitrary"),  # rows over TCs, K accum
            vmem_limit_bytes=vmem_limit,
        ),
    )(*args)


# ----------------------------- reference + demo ------------------------------


def reference_forward(adj, z, w1, b1, w2):
    rowsum = jnp.sum(adj, axis=1, keepdims=True)
    r_inv = jnp.where(rowsum == 0.0, 0.0, 1.0 / rowsum)
    adj_n = adj * r_inv
    zz = adj_n @ z
    h = jnp.tanh(zz @ w1 + b1)
    return h @ w2


if __name__ == "__main__":
    key = jax.random.PRNGKey(0)

    def make_inputs(k, N, in_size, hidden_size, out_size=384):
        k_adj, k_z, k_w1, k_b1, k_w2 = jax.random.split(k, 5)
        adj = jax.random.uniform(k_adj, (N, N), dtype=jnp.float32)
        adj = adj.at[3].set(0.0)                   # exercise the inf -> 0 branch
        z = jax.random.normal(k_z, (N, in_size), jnp.float32)
        w1 = jax.random.normal(k_w1, (in_size, hidden_size), jnp.float32) * 0.1
        b1 = jax.random.normal(k_b1, (1, hidden_size), jnp.float32) * 0.1
        w2 = jax.random.normal(k_w2, (hidden_size, out_size), jnp.float32) * 0.1
        return adj, z, w1, b1, w2

    k1, k2, k3 = jax.random.split(key, 3)
    out_size = 384

    # Case 1: in == hidden (no reassociation), single K block, 2 row tiles.
    N, in_size, hidden_size = 64, 32, 32
    adj, z, w1, b1, w2 = make_inputs(k1, N, in_size, hidden_size, out_size)
    ref = reference_forward(adj, z, w1, b1, w2)

    out = jax.block_until_ready(
        features_forward(adj, z, w1, b1, w2, block_rows=32, use_bf16=False))
    assert out.shape == (N, out_size)
    assert jnp.allclose(out, ref, atol=1e-4, rtol=1e-4), "f32 mismatch vs reference"

    out_bf16 = jax.block_until_ready(
        features_forward(adj, z, w1, b1, w2, block_rows=32, use_bf16=True))
    assert jnp.allclose(out_bf16, ref, atol=5e-2, rtol=5e-2), "bf16 mismatch vs reference"

    # Case 2: hidden < in -> reassociated (A z) W1 = A (z W1) path, auto tiling.
    N2, in2, hid2 = 64, 64, 32
    adj2, z2, w12, b12, w22 = make_inputs(k2, N2, in2, hid2, out_size)
    ref2 = reference_forward(adj2, z2, w12, b12, w22)
    out2 = jax.block_until_ready(features_forward(adj2, z2, w12, b12, w22))
    assert jnp.allclose(out2, ref2, atol=1e-4, rtol=1e-4), "reassociated mismatch"

    # Case 3: K-tiled path with ragged last K block (remainder masking),
    # ragged row tiles, and deeper (3-buffer) adj pipelining.
    N3, in3, hid3 = 200, 48, 64
    adj3, z3, w13, b13, w23 = make_inputs(k3, N3, in3, hid3, out_size)
    ref3 = reference_forward(adj3, z3, w13, b13, w23)
    out3 = jax.block_until_ready(
        features_forward(adj3, z3, w13, b13, w23, block_rows=32, block_k=128))
    assert jnp.allclose(out3, ref3, atol=1e-4, rtol=1e-4), "K-tiled mismatch"

    print("KERNEL_OK")
</pallas_src>

<mosaic_0001>
module attributes {stable_mosaic.version = 11 : i64} {
  func.func @kernel(%arg0: i32, %arg1: i32, %arg2: memref<32x64xf32, #tpu.memory_space<vmem>>, %arg3: memref<64x33xf32, #tpu.memory_space<vmem>>, %arg4: memref<32x32xf32, #tpu.memory_space<vmem>>, %arg5: memref<1x32xf32, #tpu.memory_space<vmem>>, %arg6: memref<32x384xf32, #tpu.memory_space<vmem>>, %arg7: memref<32x384xf32, #tpu.memory_space<vmem>>, %arg8: memref<32x33xf32, #tpu.memory_space<vmem>>) attributes {dimension_semantics = [#tpu.dimension_semantics<parallel>, #tpu.dimension_semantics<arbitrary>], iteration_bounds = array<i64: 2, 1>, scalar_prefetch = 0 : i64, scratch_operands = 1 : i64, tpu.core_type = #tpu.core_type<tc>, window_params = [{transform_indices = @transform_0, window_bounds = array<i64: 32, 64>}, {transform_indices = @transform_1, window_bounds = array<i64: 64, 33>}, {pipeline_mode = #tpu.pipeline_mode<synchronous>, transform_indices = @transform_2, window_bounds = array<i64: 32, 32>}, {pipeline_mode = #tpu.pipeline_mode<synchronous>, transform_indices = @transform_3, window_bounds = array<i64: 1, 32>}, {pipeline_mode = #tpu.pipeline_mode<synchronous>, transform_indices = @transform_4, window_bounds = array<i64: 32, 384>}, {transform_indices = @transform_5, window_bounds = array<i64: 32, 384>}]} {
    %c0_i32 = arith.constant 0 : i32
    %0 = arith.cmpi eq, %arg1, %c0_i32 : i32
    %1 = arith.extui %0 : i1 to i32
    %c0_i32_0 = arith.constant 0 : i32
    %2 = arith.cmpi ne, %1, %c0_i32_0 : i32
    scf.if %2 {
      %cst_10 = arith.constant 0.000000e+00 : f32
      %12 = vector.broadcast %cst_10 : f32 to vector<32x33xf32>
      %c0_11 = arith.constant 0 : index
      %c0_12 = arith.constant 0 : index
      %13 = vector.load %arg8[%c0_11, %c0_12] : memref<32x33xf32, #tpu.memory_space<vmem>>, vector<32x33xf32>
      tpu.vector_store %arg8[%c0_11, %c0_12], %12 {strides = array<i32>} : memref<32x33xf32, #tpu.memory_space<vmem>>, vector<32x33xf32>,
    } else {
    }
    %c0 = arith.constant 0 : index
    %c0_1 = arith.constant 0 : index
    %3 = vector.load %arg2[%c0, %c0_1] : memref<32x64xf32, #tpu.memory_space<vmem>>, vector<32x64xf32>
    %c0_2 = arith.constant 0 : index
    %c0_3 = arith.constant 0 : index
    %4 = vector.load %arg8[%c0_2, %c0_3] : memref<32x33xf32, #tpu.memory_space<vmem>>, vector<32x33xf32>
    %c0_4 = arith.constant 0 : index
    %c0_5 = arith.constant 0 : index
    %5 = vector.load %arg3[%c0_4, %c0_5] : memref<64x33xf32, #tpu.memory_space<vmem>>, vector<64x33xf32>
    %cst = arith.constant dense<0.000000e+00> : vector<32x33xf32>
    %6 = tpu.matmul %3, %5, %cst {dimension_numbers = #tpu.dot_dimension_numbers<[1], [0], [0], [1], [0, 0, 1, 1], [], []>} : vector<32x64xf32>, vector<64x33xf32>, vector<32x33xf32> -> vector<32x33xf32>
    %7 = arith.addf %4, %6 : vector<32x33xf32>
    %c0_6 = arith.constant 0 : index
    %c0_7 = arith.constant 0 : index
    %8 = vector.load %arg8[%c0_6, %c0_7] : memref<32x33xf32, #tpu.memory_space<vmem>>, vector<32x33xf32>
    tpu.vector_store %arg8[%c0_6, %c0_7], %7 {strides = array<i32>} : memref<32x33xf32, #tpu.memory_space<vmem>>, vector<32x33xf32>,
    %c0_i32_8 = arith.constant 0 : i32
    %9 = arith.cmpi eq, %arg1, %c0_i32_8 : i32
    %10 = arith.extui %9 : i1 to i32
    %c0_i32_9 = arith.constant 0 : i32
    %11 = arith.cmpi ne, %10, %c0_i32_9 : i32
    scf.if %11 {
      %c0_10 = arith.constant 0 : index
      %c0_11 = arith.constant 0 : index
      %12 = vector.load %arg8[%c0_10, %c0_11] : memref<32x33xf32, #tpu.memory_space<vmem>>, vector<32x33xf32>
      %13 = vector.extract_strided_slice %12 {offsets = [0, 32], sizes = [32, 1], strides = [1, 1]} : vector<32x33xf32> to vector<32x1xf32>
      %cst_12 = arith.constant 0.000000e+00 : f32
      %14 = vector.broadcast %cst_12 : f32 to vector<32x1xf32>
      %15 = arith.cmpf oeq, %13, %14 : vector<32x1xf32>
      %cst_13 = arith.constant 1.000000e+00 : f32
      %16 = vector.broadcast %cst_13 : f32 to vector<32x1xf32>
      %17 = arith.divf %16, %13 : vector<32x1xf32>
      %cst_14 = arith.constant 0.000000e+00 : f32
      %18 = vector.broadcast %cst_14 : f32 to vector<32x1xf32>
      %19 = arith.select %15, %18, %17 : vector<32x1xi1>, vector<32x1xf32>
      %20 = vector.extract_strided_slice %12 {offsets = [0, 0], sizes = [32, 32], strides = [1, 1]} : vector<32x33xf32> to vector<32x32xf32>
      %21 = vector.broadcast %19 : vector<32x1xf32> to vector<32x32xf32>
      %22 = arith.mulf %20, %21 : vector<32x32xf32>
      %c0_15 = arith.constant 0 : index
      %c0_16 = arith.constant 0 : index
      %23 = vector.load %arg4[%c0_15, %c0_16] : memref<32x32xf32, #tpu.memory_space<vmem>>, vector<32x32xf32>
      %cst_17 = arith.constant dense<0.000000e+00> : vector<32x32xf32>
      %24 = tpu.matmul %22, %23, %cst_17 {dimension_numbers = #tpu.dot_dimension_numbers<[1], [0], [0], [1], [0, 0, 1, 1], [], []>} : vector<32x32xf32>, vector<32x32xf32>, vector<32x32xf32> -> vector<32x32xf32>
      %c0_18 = arith.constant 0 : index
      %c0_19 = arith.constant 0 : index
      %25 = vector.load %arg5[%c0_18, %c0_19] : memref<1x32xf32, #tpu.memory_space<vmem>>, vector<1x32xf32>
      %26 = vector.broadcast %25 : vector<1x32xf32> to vector<32x32xf32>
      %27 = arith.addf %24, %26 : vector<32x32xf32>
      %28 = math.tanh %27 : vector<32x32xf32>
      %c0_20 = arith.constant 0 : index
      %c0_21 = arith.constant 0 : index
      %29 = vector.load %arg6[%c0_20, %c0_21] : memref<32x384xf32, #tpu.memory_space<vmem>>, vector<32x384xf32>
      %cst_22 = arith.constant dense<0.000000e+00> : vector<32x384xf32>
      %30 = tpu.matmul %28, %29, %cst_22 {dimension_numbers = #tpu.dot_dimension_numbers<[1], [0], [0], [1], [0, 0, 1, 1], [], []>} : vector<32x32xf32>, vector<32x384xf32>, vector<32x384xf32> -> vector<32x384xf32>
      %c0_23 = arith.constant 0 : index
      %c0_24 = arith.constant 0 : index
      %31 = vector.load %arg7[%c0_23, %c0_24] : memref<32x384xf32, #tpu.memory_space<vmem>>, vector<32x384xf32>
      tpu.vector_store %arg7[%c0_23, %c0_24], %30 {strides = array<i32>} : memref<32x384xf32, #tpu.memory_space<vmem>>, vector<32x384xf32>,
    } else {
    }
    return
  }
  func.func @transform_0(%arg0: i32, %arg1: i32) -> (i32, i32) {
    %c0_i32 = arith.constant 0 : i32
    return %arg0, %arg1 : i32, i32
  }
  func.func @transform_1(%arg0: i32, %arg1: i32) -> (i32, i32) {
    %c0_i32 = arith.constant 0 : i32
    %c0_i32_0 = arith.constant 0 : i32
    return %arg1, %c0_i32 : i32, i32
  }
  func.func @transform_2(%arg0: i32, %arg1: i32) -> (i32, i32) {
    %c0_i32 = arith.constant 0 : i32
    %c0_i32_0 = arith.constant 0 : i32
    %c0_i32_1 = arith.constant 0 : i32
    return %c0_i32, %c0_i32_0 : i32, i32
  }
  func.func @transform_3(%arg0: i32, %arg1: i32) -> (i32, i32) {
    %c0_i32 = arith.constant 0 : i32
    %c0_i32_0 = arith.constant 0 : i32
    %c0_i32_1 = arith.constant 0 : i32
    return %c0_i32, %c0_i32_0 : i32, i32
  }
  func.func @transform_4(%arg0: i32, %arg1: i32) -> (i32, i32) {
    %c0_i32 = arith.constant 0 : i32
    %c0_i32_0 = arith.constant 0 : i32
    %c0_i32_1 = arith.constant 0 : i32
    return %c0_i32, %c0_i32_0 : i32, i32
  }
  func.func @transform_5(%arg0: i32, %arg1: i32) -> (i32, i32) {
    %c0_i32 = arith.constant 0 : i32
    %c0_i32_0 = arith.constant 0 : i32
    return %arg0, %c0_i32 : i32, i32
  }
}

</mosaic_0001>

<llo_original>
// kernel: tpu_custom_call.1
$region0: #{tpu_custom_call.1}
  #allocation0 [shape = 'u32[]', space=smem, size = 0x4, offset = 0x4, fixed_abs, tag = 'smem constant byte address 0x4 - core index']
  #allocation1 [shape = 'u32[144,128]{1,0:T(1,128)}', space=vmem, size = 0x12000, scoped, tag = 'internal scratch']
  #allocation2 [shape = 'f32[32,33]{1,0:T(8,128)}', space=vmem, size = 0x4000, scoped, tag = 'scratch operand']
  %s0 = inlined_call_operand.hbm [shape: f32[64,64], index: 0, kind: input, shape index: {}]
  %s1 = inlined_call_operand.vmem [shape: f32[64,33], index: 1, kind: input, shape index: {}]
  %s2 = inlined_call_operand.hbm [shape: f32[32,32], index: 2, kind: input, shape index: {}]
  %s3 = inlined_call_operand.vmem [shape: f32[1,32], index: 3, kind: input, shape index: {}]
  %s4 = inlined_call_operand.vmem [shape: f32[32,384], index: 4, kind: input, shape index: {}]
  %s5 = inlined_call_operand.hbm [shape: f32[64,384], index: 5, kind: output, shape index: {}]
  %s6 = sld [smem:[#allocation0]]
  $region69: #{tpu_custom_call.1} parent=0
    _
  %s8 = ssub.s32 1, %s6
  %s9 = scalar_select 0, %s8, %s6
  $region1: #{tpu_custom_call.1} parent=0
    #allocation3 [shape = 'u8[32768]{0}', space=vmem, size = 0x8000, scoped, tag = 'input window, operand 0']
    #allocation4 [shape = 's32[2]{0}', space=sflag, size = 0x8, scoped, tag = 'scoped memory for tpu_custom_call.1']
    #allocation5 [shape = 's32[2]{0}', space=sflag, size = 0x8, scoped, tag = 'scoped memory for tpu_custom_call.1']
    #allocation6 [shape = 'u8[16384]{0}', space=vmem, size = 0x4000, scoped, tag = 'input window, operand 2, single buffered']
    #allocation7 [shape = 's32[1]{0}', space=sflag, size = 0x4, scoped, tag = 'scoped memory for tpu_custom_call.1']
    #allocation8 [shape = 'u8[98304]{0}', space=vmem, size = 0x18000, scoped, tag = 'output window, operand 0']
    %10 = vsyncpa [#allocation4], 0
    %s11 = scalar_lea.sflag [#allocation4], 1
    %12 = vsyncpa %s11, 0
    %13 = vsyncpa [#allocation7], 0
    %14 = vsyncpa [#allocation5], 0
    %s15 = scalar_lea.sflag [#allocation5], 1
    %16 = vsyncpa %s15, 0
    loop: start=0, step=1, limit=4
    $region2: #{tpu_custom_call.1} parent=1 // loop_pre_header
      _
    $region3: #{tpu_custom_call.1} parent=1 // loop_header
      %s18 = sphi 0, %s22
      %p19 = scmp.ge.s32.totalorder %s18, 4
      %s25 = sphi 0, %s37
      %s26 = sphi 0, %s33
      %s27 = sphi 0, %s25
      %s28 = sphi 0, %s26
      %s29 = sphi 0, %s27
      %s30 = sphi 0, %s28
      %s42 = sphi 0, %s44
      %s45 = sphi 0, %s42
      %s46 = sphi 0, %s45
      %s62 = sphi 0, %s46
      %s68 = sphi 0, %s70
      %s71 = sphi 0, %s68
      %s72 = sphi 0, %s71
      %s88 = sphi 0, %s72
      %s92 = sphi 0, %s92
      %s94 = sphi 0, %s92
      %s95 = sphi 0, %s94
      %s109 = sphi 0, %s95
      %s113 = sphi 0, %s113
      %s115 = sphi 0, %s113
      %s116 = sphi 0, %s115
      %s130 = sphi 0, %s116
      %s134 = sphi 0, %s134
      %s136 = sphi 0, %s134
      %s137 = sphi 0, %s136
      %s151 = sphi 0, %s137
      %s157 = sphi 0, %s159
      %s160 = sphi 0, %s157
      %s161 = sphi 0, %s160
      %s177 = sphi 0, %s161
    $region4: #{tpu_custom_call.1} parent=1 // loop_header_branch
      %21 = sbr.rel (%p19) target = $region8
    $region5: #{tpu_custom_call.1} parent=1 // loop_body
      %s23 = ssub.s32 %s18, 1
      %s24 = ssub.s32 %s18, 2
      %s31 = sadd.s32 1, %s26
      %p32 = scmp.ge.s32.totalorder %s31, 1
      %s33 = scalar_select %p32, 0, %s31
      %s34 = sadd.s32 1, %s25
      %s35 = scalar_select %p32, %s34, %s25
      %p36 = scmp.ge.s32.totalorder %s35, 2
      %s37 = scalar_select %p36, 0, %s35
      %s38 = ssub.s32 %s25, %s37
      %s39 = ssub.s32 %s26, %s33
      %s40 = sor.u32 %s38, %s39
      %p41 = scmp.eq.s32.totalorder %s40, 0
      %s43 = sadd.s32 %s42, 1
      %s44 = scalar_select %p41, %s42, %s43
      %p47 = pneg %p41
      %p48 = scmp.eq.s32.totalorder %s18, 1
      %p49 = por %p47, %p48
      %p50 = scmp.ne.s32.totalorder %s42, %s45
      %p51 = scmp.eq.s32.totalorder %s18, 0
      %p52 = por %p50, %p51
      %p53 = scmp.ne.s32.totalorder %s42, %s45
      %p54 = scmp.eq.s32.totalorder %s23, 1
      %p55 = por %p53, %p54
      %p56 = scmp.ne.s32.totalorder %s45, %s46
      %p57 = scmp.eq.s32.totalorder %s23, 0
      %p58 = por %p56, %p57
      %p59 = scmp.ne.s32.totalorder %s45, %s46
      %p60 = scmp.eq.s32.totalorder %s24, 1
      %p61 = por %p59, %p60
      %p63 = scmp.ne.s32.totalorder %s46, %s62
      %p64 = scmp.eq.s32.totalorder %s24, 0
      %p65 = por %p63, %p64
      %s66 = ssub.s32 %s26, %s33
      %p67 = scmp.eq.s32.totalorder %s66, 0
      %s69 = sadd.s32 %s68, 1
      %s70 = scalar_select %p67, %s68, %s69
      %p73 = pneg %p67
      %p74 = scmp.eq.s32.totalorder %s18, 1
      %p75 = por %p73, %p74
      %p76 = scmp.ne.s32.totalorder %s68, %s71
      %p77 = scmp.eq.s32.totalorder %s18, 0
      %p78 = por %p76, %p77
      %p79 = scmp.ne.s32.totalorder %s68, %s71
      %p80 = scmp.eq.s32.totalorder %s23, 1
      %p81 = por %p79, %p80
      %p82 = scmp.ne.s32.totalorder %s71, %s72
      %p83 = scmp.eq.s32.totalorder %s23, 0
      %p84 = por %p82, %p83
      %p85 = scmp.ne.s32.totalorder %s71, %s72
      %p86 = scmp.eq.s32.totalorder %s24, 1
      %p87 = por %p85, %p86
      %p89 = scmp.ne.s32.totalorder %s72, %s88
      %p90 = scmp.eq.s32.totalorder %s24, 0
      %p91 = por %p89, %p90
      %s93 = sadd.s32 %s92, 1
      %p96 = scmp.eq.s32.totalorder %s18, 1
      %p97 = scmp.ne.s32.totalorder %s92, %s94
      %p98 = scmp.eq.s32.totalorder %s18, 0
      %p99 = por %p97, %p98
      %p100 = scmp.ne.s32.totalorder %s92, %s94
      %p101 = scmp.eq.s32.totalorder %s23, 1
      %p102 = por %p100, %p101
      %p103 = scmp.ne.s32.totalorder %s94, %s95
      %p104 = scmp.eq.s32.totalorder %s23, 0
      %p105 = por %p103, %p104
      %p106 = scmp.ne.s32.totalorder %s94, %s95
      %p107 = scmp.eq.s32.totalorder %s24, 1
      %p108 = por %p106, %p107
      %p110 = scmp.ne.s32.totalorder %s95, %s109
      %p111 = scmp.eq.s32.totalorder %s24, 0
      %p112 = por %p110, %p111
      %s114 = sadd.s32 %s113, 1
      %p117 = scmp.eq.s32.totalorder %s18, 1
      %p118 = scmp.ne.s32.totalorder %s113, %s115
      %p119 = scmp.eq.s32.totalorder %s18, 0
      %p120 = por %p118, %p119
      %p121 = scmp.ne.s32.totalorder %s113, %s115
      %p122 = scmp.eq.s32.totalorder %s23, 1
      %p123 = por %p121, %p122
      %p124 = scmp.ne.s32.totalorder %s115, %s116
      %p125 = scmp.eq.s32.totalorder %s23, 0
      %p126 = por %p124, %p125
      %p127 = scmp.ne.s32.totalorder %s115, %s116
      %p128 = scmp.eq.s32.totalorder %s24, 1
      %p129 = por %p127, %p128
      %p131 = scmp.ne.s32.totalorder %s116, %s130
      %p132 = scmp.eq.s32.totalorder %s24, 0
      %p133 = por %p131, %p132
      %s135 = sadd.s32 %s134, 1
      %p138 = scmp.eq.s32.totalorder %s18, 1
      %p139 = scmp.ne.s32.totalorder %s134, %s136
      %p140 = scmp.eq.s32.totalorder %s18, 0
      %p141 = por %p139, %p140
      %p142 = scmp.ne.s32.totalorder %s134, %s136
      %p143 = scmp.eq.s32.totalorder %s23, 1
      %p144 = por %p142, %p143
      %p145 = scmp.ne.s32.totalorder %s136, %s137
      %p146 = scmp.eq.s32.totalorder %s23, 0
      %p147 = por %p145, %p146
      %p148 = scmp.ne.s32.totalorder %s136, %s137
      %p149 = scmp.eq.s32.totalorder %s24, 1
      %p150 = por %p148, %p149
      %p152 = scmp.ne.s32.totalorder %s137, %s151
      %p153 = scmp.eq.s32.totalorder %s24, 0
      %p154 = por %p152, %p153
      %s155 = ssub.s32 %s25, %s37
      %p156 = scmp.eq.s32.totalorder %s155, 0
      %s158 = sadd.s32 %s157, 1
      %s159 = scalar_select %p156, %s157, %s158
      %p162 = pneg %p156
      %p163 = scmp.eq.s32.totalorder %s18, 1
      %p164 = por %p162, %p163
      %p165 = scmp.ne.s32.totalorder %s157, %s160
      %p166 = scmp.eq.s32.totalorder %s18, 0
      %p167 = por %p165, %p166
      %p168 = scmp.ne.s32.totalorder %s157, %s160
      %p169 = scmp.eq.s32.totalorder %s23, 1
      %p170 = por %p168, %p169
      %p171 = scmp.ne.s32.totalorder %s160, %s161
      %p172 = scmp.eq.s32.totalorder %s23, 0
      %p173 = por %p171, %p172
      %p174 = scmp.ne.s32.totalorder %s160, %s161
      %p175 = scmp.eq.s32.totalorder %s24, 1
      %p176 = por %p174, %p175
      %p178 = scmp.ne.s32.totalorder %s161, %s177
      %p179 = scmp.eq.s32.totalorder %s24, 0
      %p180 = por %p178, %p179
      %p181 = scmp.le.s32.totalorder 1, %s18
      %p182 = scmp.lt.s32.totalorder %s18, 3
      %p183 = pnand %p181, %p182
      %p184 = pneg %p183
      // Predicated region
      $region9: #{tpu_custom_call.1} parent=5 // pred_check
        _
      $region10: #{tpu_custom_call.1} parent=5 // pred_check_branch
        %186 = sbr.rel (%p183) target = $region12
      $region11: #{tpu_custom_call.1} parent=5 // pred_region
        %s187 = ssub.s32 %s18, 1
        // Predicated region
        $region13: #{tpu_custom_call.1} parent=11 // pred_check
          %p188 = pneg %p84
        $region14: #{tpu_custom_call.1} parent=11 // pred_check_branch
          %190 = sbr.rel (%p188) target = $region16
        $region15: #{tpu_custom_call.1} parent=11 // pred_region
          %s191 = smul.u32 8, %s28
          %p192 = scmp.lt.s32.totalorder %s191, 7
          %s193 = scalar_select %p192, %s191, 7
          %s194 = smul.addr %s193, 8
          %s195 = scalar_lea.vmem %s1, %s194
          %s196 = smul.u32 8, %s28
        $region16: #{tpu_custom_call.1} parent=11 // pred_fallthru
          _
        // Predicated region
        $region17: #{tpu_custom_call.1} parent=11 // pred_check
          %p197 = pneg %p105
        $region18: #{tpu_custom_call.1} parent=11 // pred_check_branch
          %199 = sbr.rel (%p197) target = $region20
        $region19: #{tpu_custom_call.1} parent=11 // pred_region
          %s201 = ssub.s32 512, 512
          %202 = vsyncadd [#allocation7], %s201
          %s203 = sshll.u32 [#allocation6], 4
          %s204 = int_to_ptr.vmem [resolvable:$true] %s203
          %209 = dma.hbm_to_vmem [thread:$0]  %s2, 512, %s204, [#allocation7], 128, 128, 8
        $region20: #{tpu_custom_call.1} parent=11 // pred_fallthru
          _
        // Predicated region
        $region21: #{tpu_custom_call.1} parent=11 // pred_check
          %p210 = pneg %p126
        $region22: #{tpu_custom_call.1} parent=11 // pred_check_branch
          %212 = sbr.rel (%p210) target = $region24
        $region23: #{tpu_custom_call.1} parent=11 // pred_region
          _
        $region24: #{tpu_custom_call.1} parent=11 // pred_fallthru
          _
        // Predicated region
        $region25: #{tpu_custom_call.1} parent=11 // pred_check
          %p213 = pneg %p147
        $region26: #{tpu_custom_call.1} parent=11 // pred_check_branch
          %215 = sbr.rel (%p213) target = $region28
        $region27: #{tpu_custom_call.1} parent=11 // pred_region
          _
        $region28: #{tpu_custom_call.1} parent=11 // pred_fallthru
          _
      $region12: #{tpu_custom_call.1} parent=5 // pred_fallthru
        _
      %p216 = scmp.lt.s32.totalorder %s18, 2
      // Predicated region
      $region29: #{tpu_custom_call.1} parent=5 // pred_check
        %p217 = pneg %p216
      $region30: #{tpu_custom_call.1} parent=5 // pred_check_branch
        %219 = sbr.rel (%p217) target = $region32
      $region31: #{tpu_custom_call.1} parent=5 // pred_region
        // Predicated region
        $region33: #{tpu_custom_call.1} parent=31 // pred_check
          %p220 = pneg %p52
        $region34: #{tpu_custom_call.1} parent=31 // pred_check_branch
          %222 = sbr.rel (%p220) target = $region36
        $region35: #{tpu_custom_call.1} parent=31 // pred_region
          %s223 = sand.u32 %s42, 1
          %s224 = scalar_lea.sflag [#allocation4], %s223
          %s225 = sand.u32 %s42, 1
          %s226 = smul.addr %s225, 32
          %s227 = scalar_lea.vmem [#allocation3], %s226
          %s228 = smul.u32 4, %s25
          %s230 = ssub.s32 512, 512
          %231 = vsyncadd %s224, %s230
          %s232 = sadd.s32 %s26, %s228
          %s233 = smul.addr %s232, 128
          %s234 = scalar_lea.hbm %s0, %s233
          %s235 = sshll.u32 %s227, 4
          %s236 = int_to_ptr.vmem [resolvable:$true] %s235
          %241 = dma.hbm_to_vmem [thread:$0]  %s234, 512, %s236, %s224, 128, 128, 8
        $region36: #{tpu_custom_call.1} parent=31 // pred_fallthru
          _
      $region32: #{tpu_custom_call.1} parent=5 // pred_fallthru
        _
      %p242 = scmp.le.s32.totalorder 1, %s18
      %p243 = scmp.lt.s32.totalorder %s18, 3
      %p244 = pnand %p242, %p243
      %p245 = pneg %p244
      // Predicated region
      $region37: #{tpu_custom_call.1} parent=5 // pred_check
        _
      $region38: #{tpu_custom_call.1} parent=5 // pred_check_branch
        %247 = sbr.rel (%p244) target = $region40
      $region39: #{tpu_custom_call.1} parent=5 // pred_region
        %s248 = ssub.s32 %s18, 1
        %s249 = sand.u32 %s45, 1
        %s250 = scalar_lea.sflag [#allocation4], %s249
        %s251 = sand.u32 %s45, 1
        %s252 = smul.addr %s251, 32
        %s253 = scalar_lea.vmem [#allocation3], %s252
        // Predicated region
        $region41: #{tpu_custom_call.1} parent=39 // pred_check
          %p254 = pneg %p58
        $region42: #{tpu_custom_call.1} parent=39 // pred_check_branch
          %256 = sbr.rel (%p254) target = $region44
        $region43: #{tpu_custom_call.1} parent=39 // pred_region
          %257 = dma.done %s250, 512
        $region44: #{tpu_custom_call.1} parent=39 // pred_fallthru
          _
        // Predicated region
        $region45: #{tpu_custom_call.1} parent=39 // pred_check
          %p258 = pneg %p105
        $region46: #{tpu_custom_call.1} parent=39 // pred_check_branch
          %260 = sbr.rel (%p258) target = $region48
        $region47: #{tpu_custom_call.1} parent=39 // pred_region
          %261 = dma.done [#allocation7], 512
        $region48: #{tpu_custom_call.1} parent=39 // pred_fallthru
          _
        %s262 = sand.u32 %s45, 1
        %s263 = scalar_lea.sflag [#allocation4], %s262
        %s264 = sand.u32 %s45, 1
        %s265 = smul.addr %s264, 32
        %s266 = scalar_lea.vmem [#allocation3], %s265
        %p267 = pneg %p58
        %p268 = pneg %p55
        %s269 = smul.u32 8, %s28
        %p270 = scmp.lt.s32.totalorder %s269, 7
        %s271 = scalar_select %p270, %s269, 7
        %s272 = smul.addr %s271, 8
        %s273 = scalar_lea.vmem %s1, %s272
        %p274 = pneg %p84
        %p275 = pneg %p81
        %p276 = pneg %p105
        %p277 = pneg %p102
        %p278 = pneg %p126
        %p279 = pneg %p123
        %p280 = pneg %p147
        %p281 = pneg %p144
        %p282 = pneg %p173
        %p283 = pneg %p170
        %s284 = sand.u32 %s160, 1
        %s285 = scalar_lea.sflag [#allocation5], %s284
        %s286 = sand.u32 %s160, 1
        %s287 = smul.addr %s286, 96
        %s288 = scalar_lea.vmem [#allocation8], %s287
        %s289 = smul.u32 4, %s27
        %s290 = smul.u32 8, %s28
        %p291 = scmp.lt.s32.totalorder %s290, 7
        %s292 = scalar_select %p291, %s290, 7
        %s293 = smul.addr %s292, 8
        %s294 = scalar_lea.vmem %s1, %s293
        %s295 = smul.u32 8, %s28
        %s296 = smul.u32 4, %s27
        %p297 = scmp.eq.s32.totalorder %s28, 0
        // Predicated region
        $region49: #{tpu_custom_call.1} parent=39 // pred_check
          %p298 = pneg %p297
        $region50: #{tpu_custom_call.1} parent=39 // pred_check_branch
          %300 = sbr.rel (%p298) target = $region52
        $region51: #{tpu_custom_call.1} parent=39 // pred_region
          %vm301 = vcmask 269312
          %302 = vst.msk [vmem:[#allocation2] sm:$0xff] %vm301, 0.0
          %303 = vst.msk [vmem:[#allocation2 + $0x8] sm:$0xff] %vm301, 0.0
          %304 = vst.msk [vmem:[#allocation2 + $0x10] sm:$0xff] %vm301, 0.0
          %305 = vst.msk [vmem:[#allocation2 + $0x18] sm:$0xff] %vm301, 0.0
        $region52: #{tpu_custom_call.1} parent=39 // pred_fallthru
          _
        %v306 = vld [vmem:[%s253] sm:$0xff]
        %v307 = vld [vmem:[%s253 + $0x8] sm:$0xff]
        %v308 = vld [vmem:[%s253 + $0x10] sm:$0xff]
        %v309 = vld [vmem:[%s253 + $0x18] sm:$0xff]
        %v310 = vld [vmem:[#allocation2] sm:$0xff]
        %v311 = vld [vmem:[#allocation2 + $0x8] sm:$0xff]
        %v312 = vld [vmem:[#allocation2 + $0x10] sm:$0xff]
        %v313 = vld [vmem:[#allocation2 + $0x18] sm:$0xff]
        %v314 = vld [vmem:[%s294] sm:$0xff]
        %v315 = vld [vmem:[%s294 + $0x8] sm:$0xff]
        %v316 = vld [vmem:[%s294 + $0x10] sm:$0xff]
        %v317 = vld [vmem:[%s294 + $0x18] sm:$0xff]
        %v318 = vld [vmem:[%s294 + $0x20] sm:$0xff]
        %v319 = vld [vmem:[%s294 + $0x28] sm:$0xff]
        %v320 = vld [vmem:[%s294 + $0x30] sm:$0xff]
        %v321 = vld [vmem:[%s294 + $0x38] sm:$0xff]
        %vm322 = vcmask 523264
        %v324 = vsel %vm322, %v306, 0
        %v327 = vsel %vm322, %v307, 0
        %v330 = vsel %vm322, %v308, 0
        %v333 = vsel %vm322, %v309, 0
        %335 = vmatprep.subr.mxu0 0.0
        %336 = vmatpush1.msra.mxu0 0.0
        %337 = vmatprep.subr.mxu0 0.0
        %338 = vmatpush1.msra.mxu0 0.0
        %339 = vmatprep.subr.mxu0 0.0
        %340 = vmatpush1.msra.mxu0 0.0
        %341 = vmatprep.subr.mxu0 0.0
        %342 = vmatpush1.msra.mxu0 0.0
        %343 = vmatprep.subr.mxu0 0.0
        %344 = vmatpush1.msra.mxu0 0.0
        %345 = vmatprep.subr.mxu0 0.0
        %346 = vmatpush1.msra.mxu0 0.0
        %347 = vmatprep.subr.mxu0 0.0
        %348 = vmatpush1.msra.mxu0 0.0
        %349 = vmatprep.subr.mxu0 0.0
        %350 = vmatpush1.msra.mxu0 0.0
        %351 = vmatprep.subr.mxu0 0.0
        %352 = vmatpush1.msra.mxu0 %v321
        %353 = vmatprep.subr.mxu0 0.0
        %354 = vmatpush1.msra.mxu0 %v320
        %355 = vmatprep.subr.mxu0 0.0
        %356 = vmatpush1.msra.mxu0 %v319
        %357 = vmatprep.subr.mxu0 0.0
        %358 = vmatpush1.msra.mxu0 %v318
        %359 = vmatprep.subr.mxu0 0.0
        %360 = vmatpush1.msra.mxu0 %v317
        %361 = vmatprep.subr.mxu0 0.0
        %362 = vmatpush1.msra.mxu0 %v316
        %363 = vmatprep.subr.mxu0 0.0
        %364 = vmatpush1.msra.mxu0 %v315
        %365 = vmatprep.subr.mxu0 0.0
        %366 = vmatpush1.msra.mxu0 %v314
        %367 = vmatprep.subr.mxu0 0.0
        %368 = vmatpush2.msra.mxu0 0.0
        %369 = vmatprep.subr.mxu0 0.0
        %370 = vmatpush2.msra.mxu0 0.0
        %371 = vmatprep.subr.mxu0 0.0
        %372 = vmatpush2.msra.mxu0 0.0
        %373 = vmatprep.subr.mxu0 0.0
        %374 = vmatpush2.msra.mxu0 0.0
        %375 = vmatprep.subr.mxu0 0.0
        %376 = vmatpush2.msra.mxu0 0.0
        %377 = vmatprep.subr.mxu0 0.0
        %378 = vmatpush2.msra.mxu0 0.0
        %379 = vmatprep.subr.mxu0 0.0
        %380 = vmatpush2.msra.mxu0 0.0
        %381 = vmatprep.subr.mxu0 0.0
        %382 = vmatpush2.msra.mxu0 0.0
        %383 = vmatprep.subr.mxu0 0.0
        %384 = vmatpush2.msra.mxu0 0.0
        %385 = vmatprep.subr.mxu0 0.0
        %386 = vmatpush2.msra.mxu0 0.0
        %387 = vmatprep.subr.mxu0 0.0
        %388 = vmatpush2.msra.mxu0 0.0
        %389 = vmatprep.subr.mxu0 0.0
        %390 = vmatpush2.msra.mxu0 0.0
        %391 = vmatprep.subr.mxu0 0.0
        %392 = vmatpush2.msra.mxu0 0.0
        %393 = vmatprep.subr.mxu0 0.0
        %394 = vmatpush2.msra.mxu0 0.0
        %395 = vmatprep.subr.mxu0 0.0
        %396 = vmatpush2.msra.mxu0 0.0
        %397 = vmatprep.subr.mxu0 0.0
        %398 = vmatpush2.msra.mxu0 0.0
        %399 = vmatprep.mubr.f32.mxu0 0.0
        %400 = vmatmul.mubr.f32.gmra.mxu0 %v324
        %v401 = vpop.f32.mrf.mxu0
        %v402 = vadd.f32 0.0, %v401
        %v403 = vpop.f32.mrf.mxu0
        %404 = vmatprep.mubr.f32.mxu0 0.0
        %405 = vmatmul.mubr.f32.gmra.mxu0 %v327
        %v406 = vpop.f32.mrf.mxu0
        %v407 = vadd.f32 0.0, %v406
        %v408 = vpop.f32.mrf.mxu0
        %409 = vmatprep.mubr.f32.mxu0 0.0
        %410 = vmatmul.mubr.f32.gmra.mxu0 %v330
        %v411 = vpop.f32.mrf.mxu0
        %v412 = vadd.f32 0.0, %v411
        %v413 = vpop.f32.mrf.mxu0
        %414 = vmatprep.mubr.f32.mxu0 0.0
        %415 = vmatmul.mubr.f32.gmra.mxu0 %v333
        %v416 = vpop.f32.mrf.mxu0
        %v417 = vadd.f32 0.0, %v416
        %v418 = vpop.f32.mrf.mxu0
        %419 = vdwg.mxu0
        %v420 = vadd.f32 %v310, %v402
        %v421 = vadd.f32 %v311, %v407
        %v422 = vadd.f32 %v312, %v412
        %v423 = vadd.f32 %v313, %v417
        %vm424 = vcmask 269312
        %425 = vst.msk [vmem:[#allocation2] sm:$0xff] %vm424, %v420
        %426 = vst.msk [vmem:[#allocation2 + $0x8] sm:$0xff] %vm424, %v421
        %427 = vst.msk [vmem:[#allocation2 + $0x10] sm:$0xff] %vm424, %v422
        %428 = vst.msk [vmem:[#allocation2 + $0x18] sm:$0xff] %vm424, %v423
        // Predicated region
        $region53: #{tpu_custom_call.1} parent=39 // pred_check
          %p429 = pneg %p297
        $region54: #{tpu_custom_call.1} parent=39 // pred_check_branch
          %431 = sbr.rel (%p429) target = $region56
        $region55: #{tpu_custom_call.1} parent=39 // pred_region
          %v432 = vld [vmem:[#allocation2] sm:$0xff]
          %v433 = vld [vmem:[#allocation2 + $0x8] sm:$0xff]
          %v434 = vld [vmem:[#allocation2 + $0x10] sm:$0xff]
          %v435 = vld [vmem:[#allocation2 + $0x18] sm:$0xff]
          %vm436 = vcmp.eq.f32.partialorder %v432, 0.0
          %vm437 = vcmp.eq.f32.partialorder %v433, 0.0
          %vm438 = vcmp.eq.f32.partialorder %v434, 0.0
          %vm439 = vcmp.eq.f32.partialorder %v435, 0.0
          %v440 = vrcp.pop %v432
          %v441 = vmul.f32 1.0, %v440
          %v442 = vrcp.pop %v433
          %v443 = vmul.f32 1.0, %v442
          %v444 = vrcp.pop %v434
          %v445 = vmul.f32 1.0, %v444
          %v446 = vrcp.pop %v435
          %v447 = vmul.f32 1.0, %v446
          %v448 = vsel %vm436, 0.0, %v441
          %v449 = vsel %vm437, 0.0, %v443
          %v450 = vsel %vm438, 0.0, %v445
          %v451 = vsel %vm439, 0.0, %v447
          %453 = vset.pattern.permute.xlu0 32
          %454 = vperm.xlu0 %453, %v448
          %v455 = vpop.permute.xlu0 %454
          %458 = vset.pattern.permute.xlu0 32
          %459 = vperm.xlu0 %458, %v449
          %v460 = vpop.permute.xlu0 %459
          %463 = vset.pattern.permute.xlu0 32
          %464 = vperm.xlu0 %463, %v450
          %v465 = vpop.permute.xlu0 %464
          %468 = vset.pattern.permute.xlu0 32
          %469 = vperm.xlu0 %468, %v451
          %v470 = vpop.permute.xlu0 %469
          %v472 = vmul.f32 %v432, %v455
          %v473 = vmul.f32 %v433, %v460
          %v474 = vmul.f32 %v434, %v465
          %v475 = vmul.f32 %v435, %v470
          %v476 = vld [vmem:[#allocation6] sm:$0xff]
          %v477 = vld [vmem:[#allocation6 + $0x8] sm:$0xff]
          %v478 = vld [vmem:[#allocation6 + $0x10] sm:$0xff]
          %v479 = vld [vmem:[#allocation6 + $0x18] sm:$0xff]
          %v480 = vld [vmem:[%s3] sm:$0x1]
          %v482 = vlaneseq
          %v483 = vshrl.u32 %v482, 7
          %v484 = vsub.s32 0, %v483
          %v485 = vrot.slane %v480, %v484
          %vm487 = vcmask 261120
          %v489 = vsel %vm487, %v472, 0
          %v492 = vsel %vm487, %v473, 0
          %v495 = vsel %vm487, %v474, 0
          %v498 = vsel %vm487, %v475, 0
          %500 = vmatprep.subr.mxu0 0.0
          %501 = vmatpush1.msra.mxu0 0.0
          %502 = vmatprep.subr.mxu0 0.0
          %503 = vmatpush1.msra.mxu0 0.0
          %504 = vmatprep.subr.mxu0 0.0
          %505 = vmatpush1.msra.mxu0 0.0
          %506 = vmatprep.subr.mxu0 0.0
          %507 = vmatpush1.msra.mxu0 0.0
          %508 = vmatprep.subr.mxu0 0.0
          %509 = vmatpush1.msra.mxu0 0.0
          %510 = vmatprep.subr.mxu0 0.0
          %511 = vmatpush1.msra.mxu0 0.0
          %512 = vmatprep.subr.mxu0 0.0
          %513 = vmatpush1.msra.mxu0 0.0
          %514 = vmatprep.subr.mxu0 0.0
          %515 = vmatpush1.msra.mxu0 0.0
          %516 = vmatprep.subr.mxu0 0.0
          %517 = vmatpush1.msra.mxu0 0.0
          %518 = vmatprep.subr.mxu0 0.0
          %519 = vmatpush1.msra.mxu0 0.0
          %520 = vmatprep.subr.mxu0 0.0
          %521 = vmatpush1.msra.mxu0 0.0
          %522 = vmatprep.subr.mxu0 0.0
          %523 = vmatpush1.msra.mxu0 0.0
          %524 = vmatprep.subr.mxu0 0.0
          %525 = vmatpush1.msra.mxu0 %v479
          %526 = vmatprep.subr.mxu0 0.0
          %527 = vmatpush1.msra.mxu0 %v478
          %528 = vmatprep.subr.mxu0 0.0
          %529 = vmatpush1.msra.mxu0 %v477
          %530 = vmatprep.subr.mxu0 0.0
          %531 = vmatpush1.msra.mxu0 %v476
          %532 = vmatprep.subr.mxu0 0.0
          %533 = vmatpush2.msra.mxu0 0.0
          %534 = vmatprep.subr.mxu0 0.0
          %535 = vmatpush2.msra.mxu0 0.0
          %536 = vmatprep.subr.mxu0 0.0
          %537 = vmatpush2.msra.mxu0 0.0
          %538 = vmatprep.subr.mxu0 0.0
          %539 = vmatpush2.msra.mxu0 0.0
          %540 = vmatprep.subr.mxu0 0.0
          %541 = vmatpush2.msra.mxu0 0.0
          %542 = vmatprep.subr.mxu0 0.0
          %543 = vmatpush2.msra.mxu0 0.0
          %544 = vmatprep.subr.mxu0 0.0
          %545 = vmatpush2.msra.mxu0 0.0
          %546 = vmatprep.subr.mxu0 0.0
          %547 = vmatpush2.msra.mxu0 0.0
          %548 = vmatprep.subr.mxu0 0.0
          %549 = vmatpush2.msra.mxu0 0.0
          %550 = vmatprep.subr.mxu0 0.0
          %551 = vmatpush2.msra.mxu0 0.0
          %552 = vmatprep.subr.mxu0 0.0
          %553 = vmatpush2.msra.mxu0 0.0
          %554 = vmatprep.subr.mxu0 0.0
          %555 = vmatpush2.msra.mxu0 0.0
          %556 = vmatprep.subr.mxu0 0.0
          %557 = vmatpush2.msra.mxu0 0.0
          %558 = vmatprep.subr.mxu0 0.0
          %559 = vmatpush2.msra.mxu0 0.0
          %560 = vmatprep.subr.mxu0 0.0
          %561 = vmatpush2.msra.mxu0 0.0
          %562 = vmatprep.subr.mxu0 0.0
          %563 = vmatpush2.msra.mxu0 0.0
          %564 = vmatprep.mubr.f32.mxu0 0.0
          %565 = vmatmul.mubr.f32.gmra.mxu0 %v489
          %v566 = vpop.f32.mrf.mxu0
          %v567 = vadd.f32 %v485, %v566
          %v568 = vpop.f32.mrf.mxu0
          %569 = vmatprep.mubr.f32.mxu0 0.0
          %570 = vmatmul.mubr.f32.gmra.mxu0 %v492
          %v571 = vpop.f32.mrf.mxu0
          %v572 = vadd.f32 %v485, %v571
          %v573 = vpop.f32.mrf.mxu0
          %574 = vmatprep.mubr.f32.mxu0 0.0
          %575 = vmatmul.mubr.f32.gmra.mxu0 %v495
          %v576 = vpop.f32.mrf.mxu0
          %v577 = vadd.f32 %v485, %v576
          %v578 = vpop.f32.mrf.mxu0
          %579 = vmatprep.mubr.f32.mxu0 0.0
          %580 = vmatmul.mubr.f32.gmra.mxu0 %v498
          %v581 = vpop.f32.mrf.mxu0
          %v582 = vadd.f32 %v485, %v581
          %v583 = vpop.f32.mrf.mxu0
          %584 = vdwg.mxu0
          %v585 = vtanh.pop %v567
          %v586 = vtanh.pop %v572
          %v587 = vtanh.pop %v577
          %v588 = vtanh.pop %v582
          %v589 = vld [vmem:[%s4] sm:$0xff]
          %v590 = vld [vmem:[%s4 + $0x8] sm:$0xff]
          %v591 = vld [vmem:[%s4 + $0x10] sm:$0xff]
          %v592 = vld [vmem:[%s4 + $0x18] sm:$0xff]
          %v593 = vld [vmem:[%s4 + $0x20] sm:$0xff]
          %v594 = vld [vmem:[%s4 + $0x28] sm:$0xff]
          %v595 = vld [vmem:[%s4 + $0x30] sm:$0xff]
          %v596 = vld [vmem:[%s4 + $0x38] sm:$0xff]
          %v597 = vld [vmem:[%s4 + $0x40] sm:$0xff]
          %v598 = vld [vmem:[%s4 + $0x48] sm:$0xff]
          %v599 = vld [vmem:[%s4 + $0x50] sm:$0xff]
          %v600 = vld [vmem:[%s4 + $0x58] sm:$0xff]
          %v602 = vsel %vm487, %v585, 0
          %v605 = vsel %vm487, %v586, 0
          %v608 = vsel %vm487, %v587, 0
          %v611 = vsel %vm487, %v588, 0
          %613 = vmatprep.subr.mxu0 0.0
          %614 = vmatpush1.msra.mxu0 0.0
          %615 = vmatprep.subr.mxu0 0.0
          %616 = vmatpush1.msra.mxu0 0.0
          %617 = vmatprep.subr.mxu0 0.0
          %618 = vmatpush1.msra.mxu0 0.0
          %619 = vmatprep.subr.mxu0 0.0
          %620 = vmatpush1.msra.mxu0 0.0
          %621 = vmatprep.subr.mxu0 0.0
          %622 = vmatpush1.msra.mxu0 0.0
          %623 = vmatprep.subr.mxu0 0.0
          %624 = vmatpush1.msra.mxu0 0.0
          %625 = vmatprep.subr.mxu0 0.0
          %626 = vmatpush1.msra.mxu0 0.0
          %627 = vmatprep.subr.mxu0 0.0
          %628 = vmatpush1.msra.mxu0 0.0
          %629 = vmatprep.subr.mxu0 0.0
          %630 = vmatpush1.msra.mxu0 0.0
          %631 = vmatprep.subr.mxu0 0.0
          %632 = vmatpush1.msra.mxu0 0.0
          %633 = vmatprep.subr.mxu0 0.0
          %634 = vmatpush1.msra.mxu0 0.0
          %635 = vmatprep.subr.mxu0 0.0
          %636 = vmatpush1.msra.mxu0 0.0
          %637 = vmatprep.subr.mxu0 %v599
          %638 = vmatpush1.msra.mxu0 %v598
          %639 = vmatprep.subr.mxu0 %v596
          %640 = vmatpush1.msra.mxu0 %v595
          %641 = vmatprep.subr.mxu0 %v593
          %642 = vmatpush1.msra.mxu0 %v592
          %643 = vmatprep.subr.mxu0 %v590
          %644 = vmatpush1.msra.mxu0 %v589
          %645 = vmatprep.subr.mxu0 0.0
          %646 = vmatpush2.msra.mxu0 0.0
          %647 = vmatprep.subr.mxu0 0.0
          %648 = vmatpush2.msra.mxu0 0.0
          %649 = vmatprep.subr.mxu0 0.0
          %650 = vmatpush2.msra.mxu0 0.0
          %651 = vmatprep.subr.mxu0 0.0
          %652 = vmatpush2.msra.mxu0 0.0
          %653 = vmatprep.subr.mxu0 0.0
          %654 = vmatpush2.msra.mxu0 0.0
          %655 = vmatprep.subr.mxu0 0.0
          %656 = vmatpush2.msra.mxu0 0.0
          %657 = vmatprep.subr.mxu0 0.0
          %658 = vmatpush2.msra.mxu0 0.0
          %659 = vmatprep.subr.mxu0 0.0
          %660 = vmatpush2.msra.mxu0 0.0
          %661 = vmatprep.subr.mxu0 0.0
          %662 = vmatpush2.msra.mxu0 0.0
          %663 = vmatprep.subr.mxu0 0.0
          %664 = vmatpush2.msra.mxu0 0.0
          %665 = vmatprep.subr.mxu0 0.0
          %666 = vmatpush2.msra.mxu0 0.0
          %667 = vmatprep.subr.mxu0 0.0
          %668 = vmatpush2.msra.mxu0 0.0
          %669 = vmatprep.subr.mxu0 0.0
          %670 = vmatpush2.msra.mxu0 0.0
          %671 = vmatprep.subr.mxu0 0.0
          %672 = vmatpush2.msra.mxu0 0.0
          %673 = vmatprep.subr.mxu0 0.0
          %674 = vmatpush2.msra.mxu0 0.0
          %675 = vmatprep.subr.mxu0 0.0
          %676 = vmatpush2.msra.mxu0 0.0
          %677 = vmatprep.mubr.f32.mxu0 0.0
          %678 = vmatmul.mubr.f32.gmra.mxu0 %v602
          %v679 = vpop.f32.mrf.mxu0
          %v680 = vadd.f32 0.0, %v679
          %v681 = vpop.f32.mrf.mxu0
          %v682 = vadd.f32 0.0, %v681
          %683 = vmatprep.mubr.f32.mxu0 0.0
          %684 = vmatmul.mubr.f32.gmra.mxu0 %v605
          %v685 = vpop.f32.mrf.mxu0
          %v686 = vadd.f32 0.0, %v685
          %v687 = vpop.f32.mrf.mxu0
          %v688 = vadd.f32 0.0, %v687
          %689 = vmatprep.mubr.f32.mxu0 0.0
          %690 = vmatmul.mubr.f32.gmra.mxu0 %v608
          %v691 = vpop.f32.mrf.mxu0
          %v692 = vadd.f32 0.0, %v691
          %v693 = vpop.f32.mrf.mxu0
          %v694 = vadd.f32 0.0, %v693
          %695 = vmatprep.mubr.f32.mxu0 0.0
          %696 = vmatmul.mubr.f32.gmra.mxu0 %v611
          %v697 = vpop.f32.mrf.mxu0
          %v698 = vadd.f32 0.0, %v697
          %v699 = vpop.f32.mrf.mxu0
          %v700 = vadd.f32 0.0, %v699
          %701 = vdwg.mxu0
          %702 = vmatprep.subr.mxu0 0.0
          %703 = vmatpush1.msra.mxu0 0.0
          %704 = vmatprep.subr.mxu0 0.0
          %705 = vmatpush1.msra.mxu0 0.0
          %706 = vmatprep.subr.mxu0 0.0
          %707 = vmatpush1.msra.mxu0 0.0
          %708 = vmatprep.subr.mxu0 0.0
          %709 = vmatpush1.msra.mxu0 0.0
          %710 = vmatprep.subr.mxu0 0.0
          %711 = vmatpush1.msra.mxu0 0.0
          %712 = vmatprep.subr.mxu0 0.0
          %713 = vmatpush1.msra.mxu0 0.0
          %714 = vmatprep.subr.mxu0 0.0
          %715 = vmatpush1.msra.mxu0 0.0
          %716 = vmatprep.subr.mxu0 0.0
          %717 = vmatpush1.msra.mxu0 0.0
          %718 = vmatprep.subr.mxu0 0.0
          %719 = vmatpush1.msra.mxu0 0.0
          %720 = vmatprep.subr.mxu0 0.0
          %721 = vmatpush1.msra.mxu0 0.0
          %722 = vmatprep.subr.mxu0 0.0
          %723 = vmatpush1.msra.mxu0 0.0
          %724 = vmatprep.subr.mxu0 0.0
          %725 = vmatpush1.msra.mxu0 0.0
          %726 = vmatprep.subr.mxu0 0.0
          %727 = vmatpush1.msra.mxu0 %v600
          %728 = vmatprep.subr.mxu0 0.0
          %729 = vmatpush1.msra.mxu0 %v597
          %730 = vmatprep.subr.mxu0 0.0
          %731 = vmatpush1.msra.mxu0 %v594
          %732 = vmatprep.subr.mxu0 0.0
          %733 = vmatpush1.msra.mxu0 %v591
          %734 = vmatprep.subr.mxu0 0.0
          %735 = vmatpush2.msra.mxu0 0.0
          %736 = vmatprep.subr.mxu0 0.0
          %737 = vmatpush2.msra.mxu0 0.0
          %738 = vmatprep.subr.mxu0 0.0
          %739 = vmatpush2.msra.mxu0 0.0
          %740 = vmatprep.subr.mxu0 0.0
          %741 = vmatpush2.msra.mxu0 0.0
          %742 = vmatprep.subr.mxu0 0.0
          %743 = vmatpush2.msra.mxu0 0.0
          %744 = vmatprep.subr.mxu0 0.0
          %745 = vmatpush2.msra.mxu0 0.0
          %746 = vmatprep.subr.mxu0 0.0
          %747 = vmatpush2.msra.mxu0 0.0
          %748 = vmatprep.subr.mxu0 0.0
          %749 = vmatpush2.msra.mxu0 0.0
          %750 = vmatprep.subr.mxu0 0.0
          %751 = vmatpush2.msra.mxu0 0.0
          %752 = vmatprep.subr.mxu0 0.0
          %753 = vmatpush2.msra.mxu0 0.0
          %754 = vmatprep.subr.mxu0 0.0
          %755 = vmatpush2.msra.mxu0 0.0
          %756 = vmatprep.subr.mxu0 0.0
          %757 = vmatpush2.msra.mxu0 0.0
          %758 = vmatprep.subr.mxu0 0.0
          %759 = vmatpush2.msra.mxu0 0.0
          %760 = vmatprep.subr.mxu0 0.0
          %761 = vmatpush2.msra.mxu0 0.0
          %762 = vmatprep.subr.mxu0 0.0
          %763 = vmatpush2.msra.mxu0 0.0
          %764 = vmatprep.subr.mxu0 0.0
          %765 = vmatpush2.msra.mxu0 0.0
          %766 = vmatprep.mubr.f32.mxu0 0.0
          %767 = vmatmul.mubr.f32.gmra.mxu0 %v602
          %v768 = vpop.f32.mrf.mxu0
          %v769 = vadd.f32 0.0, %v768
          %v770 = vpop.f32.mrf.mxu0
          %771 = vmatprep.mubr.f32.mxu0 0.0
          %772 = vmatmul.mubr.f32.gmra.mxu0 %v605
          %v773 = vpop.f32.mrf.mxu0
          %v774 = vadd.f32 0.0, %v773
          %v775 = vpop.f32.mrf.mxu0
          %776 = vmatprep.mubr.f32.mxu0 0.0
          %777 = vmatmul.mubr.f32.gmra.mxu0 %v608
          %v778 = vpop.f32.mrf.mxu0
          %v779 = vadd.f32 0.0, %v778
          %v780 = vpop.f32.mrf.mxu0
          %781 = vmatprep.mubr.f32.mxu0 0.0
          %782 = vmatmul.mubr.f32.gmra.mxu0 %v611
          %v783 = vpop.f32.mrf.mxu0
          %v784 = vadd.f32 0.0, %v783
          %v785 = vpop.f32.mrf.mxu0
          %786 = vdwg.mxu0
          %787 = vst [vmem:[%s288] sm:$0xff] %v680
          %788 = vst [vmem:[%s288 + $0x8] sm:$0xff] %v682
          %789 = vst [vmem:[%s288 + $0x10] sm:$0xff] %v769
          %790 = vst [vmem:[%s288 + $0x18] sm:$0xff] %v686
          %791 = vst [vmem:[%s288 + $0x20] sm:$0xff] %v688
          %792 = vst [vmem:[%s288 + $0x28] sm:$0xff] %v774
          %793 = vst [vmem:[%s288 + $0x30] sm:$0xff] %v692
          %794 = vst [vmem:[%s288 + $0x38] sm:$0xff] %v694
          %795 = vst [vmem:[%s288 + $0x40] sm:$0xff] %v779
          %796 = vst [vmem:[%s288 + $0x48] sm:$0xff] %v698
          %797 = vst [vmem:[%s288 + $0x50] sm:$0xff] %v700
          %798 = vst [vmem:[%s288 + $0x58] sm:$0xff] %v784
        $region56: #{tpu_custom_call.1} parent=39 // pred_fallthru
          _
        %s799 = sand.u32 %s160, 1
        %s800 = scalar_lea.sflag [#allocation5], %s799
        %s801 = sand.u32 %s160, 1
        %s802 = smul.addr %s801, 96
        %s803 = scalar_lea.vmem [#allocation8], %s802
        // Predicated region
        $region57: #{tpu_custom_call.1} parent=39 // pred_check
          %p804 = pneg %p170
        $region58: #{tpu_custom_call.1} parent=39 // pred_check_branch
          %806 = sbr.rel (%p804) target = $region60
        $region59: #{tpu_custom_call.1} parent=39 // pred_region
          %s807 = smul.u32 4, %s27
          %s809 = ssub.s32 1536, 1536
          %810 = vsyncadd %s800, %s809
          %s811 = smul.addr %s807, 3
          %s812 = smul.addr %s811, 128
          %s813 = scalar_lea.hbm %s5, %s812
          %s814 = sshll.u32 %s803, 4
          %s815 = int_to_ptr.vmem [resolvable:$true] %s814
          %820 = dma.vmem_to_hbm [thread:$0]  %s815, 1536, %s813, %s800, 384, 384, 24
        $region60: #{tpu_custom_call.1} parent=39 // pred_fallthru
          _
      $region40: #{tpu_custom_call.1} parent=5 // pred_fallthru
        _
      %p821 = scmp.le.s32.totalorder 2, %s18
      // Predicated region
      $region61: #{tpu_custom_call.1} parent=5 // pred_check
        %p822 = pneg %p821
      $region62: #{tpu_custom_call.1} parent=5 // pred_check_branch
        %824 = sbr.rel (%p822) target = $region64
      $region63: #{tpu_custom_call.1} parent=5 // pred_region
        %s825 = ssub.s32 %s18, 2
        // Predicated region
        $region65: #{tpu_custom_call.1} parent=63 // pred_check
          %p826 = pneg %p176
        $region66: #{tpu_custom_call.1} parent=63 // pred_check_branch
          %828 = sbr.rel (%p826) target = $region68
        $region67: #{tpu_custom_call.1} parent=63 // pred_region
          %s829 = sand.u32 %s161, 1
          %s830 = scalar_lea.sflag [#allocation5], %s829
          %s831 = sand.u32 %s161, 1
          %s832 = smul.addr %s831, 96
          %s833 = scalar_lea.vmem [#allocation8], %s832
          %834 = dma.done %s830, 1536
        $region68: #{tpu_custom_call.1} parent=63 // pred_fallthru
          _
      $region64: #{tpu_custom_call.1} parent=5 // pred_fallthru
        _
    $region6: #{tpu_custom_call.1} parent=1 // loop_footer
      %s22 = sadd.s32 1, %s18
    $region7: #{tpu_custom_call.1} parent=1 // loop_footer_branch
      %17 = sbr.rel target = $region3
    $region8: #{tpu_custom_call.1} parent=1 // loop_exit
      _
    %835 = vsyncpa [#allocation4], 1
    %s836 = scalar_lea.sflag [#allocation4], 1
    %837 = vsyncpa %s836, 1
    %838 = vsyncpa [#allocation7], 1
    %839 = vsyncpa [#allocation5], 1
    %s840 = scalar_lea.sflag [#allocation5], 1
    %841 = vsyncpa %s840, 1

</llo_original>
